<compile_context>
chip_gen: v5e
topology: v5e:2x2
jax: 0.10.0
libtpu: 0.0.40
codegen_flags: <defaults>
</compile_context>

<pallas_src>
import jax
import jax.numpy as jnp
from jax.experimental import pallas as pl
from jax.experimental.pallas import tpu as pltpu

EPS = 1e-5
IN_FEATURES = 28 * 28
HIDDEN = 50
OUT = 10
HIDDEN_PAD = 128   # lane-dense hidden width
OUT_PAD = 128      # lane-dense output width
SMALL_ROWS = 8     # one full (8,128) VMEM tile for the packed small params


def mlp_bn_kernel(x_ref, w1_ref, w2_ref, small_ref, o_ref):
    # x_ref:     [B, 784]
    # w1_ref:    [784, 128]   (cols 50..127 zero)
    # w2_ref:    [128, 128]   (rows 50..127 and cols 10..127 zero)
    # small_ref: [8, 128]     row 0 = gamma, row 1 = beta, row 2 = b2 (zero-padded)
    # o_ref:     [B, 128]     lane-dense; wrapper slices [:, :10]
    x = x_ref[...]
    gamma = small_ref[0:1, :]
    beta = small_ref[1:2, :]
    b2 = small_ref[2:3, :]

    # Linear(784 -> 50), padded to 128 lanes. b1 dropped: BN mean-subtraction cancels it.
    h = jnp.dot(x, w1_ref[...], preferred_element_type=jnp.float32)  # [B, 128]

    # BatchNorm1d(50): training-mode batch statistics (biased batch variance).
    mean = jnp.mean(h, axis=0, keepdims=True)
    centered = h - mean
    var = jnp.mean(centered * centered, axis=0, keepdims=True)
    # Fold gamma into the rsqrt factor: one [1,128] mul, one [B,128] mul.
    scale = gamma * jax.lax.rsqrt(var + EPS)
    h = centered * scale + beta
    # Padded lanes (50..127): h == 0, mean == 0, gamma == 0 -> stay exactly 0.

    # ReLU
    h = jnp.maximum(h, 0.0)

    # Linear(50 -> 10), padded to [128,128]; lane-dense output store.
    o_ref[...] = jnp.dot(h, w2_ref[...], preferred_element_type=jnp.float32) + b2


def prepare_params(params):
    """One-time host-side packing/padding of the PyTorch-style params.

    params = (w1 [784,50], b1 [1,50], gamma [1,50], beta [1,50], w2 [50,10], b2 [1,10])
    Returns (w1_pad [784,128], w2_pad [128,128], small [8,128]).
    b1 is intentionally discarded (exactly cancelled by the BatchNorm mean subtraction).
    """
    w1, _b1, gamma, beta, w2, b2 = params
    w1p = jnp.zeros((IN_FEATURES, HIDDEN_PAD), jnp.float32).at[:, :HIDDEN].set(w1)
    w2p = jnp.zeros((HIDDEN_PAD, OUT_PAD), jnp.float32).at[:HIDDEN, :OUT].set(w2)
    small = jnp.zeros((SMALL_ROWS, HIDDEN_PAD), jnp.float32)
    small = small.at[0, :HIDDEN].set(gamma.reshape(-1))
    small = small.at[1, :HIDDEN].set(beta.reshape(-1))
    small = small.at[2, :OUT].set(b2.reshape(-1))
    return w1p, w2p, small


def neural_network_forward(x_nchw, prepared):
    """x_nchw: [B, 1, 28, 28] float32 -> logits [B, 10] float32."""
    B = x_nchw.shape[0]
    x2d = x_nchw.reshape(B, IN_FEATURES)  # nn.Flatten()
    w1p, w2p, small = prepared

    # Everything is tiny (<< VMEM), so the whole forward runs as a single block.
    # TODO(synk): if B is scaled up, switch to a two-pass BN (grid over batch with
    # sum/sum-of-squares accumulation) instead of one giant block.
    vmem = pl.BlockSpec(memory_space=pltpu.MemorySpace.VMEM)
    out_padded = pl.pallas_call(
        mlp_bn_kernel,
        out_shape=jax.ShapeDtypeStruct((B, OUT_PAD), jnp.float32),
        in_specs=[vmem, vmem, vmem, vmem],
        out_specs=vmem,
    )(x2d, w1p, w2p, small)
    return out_padded[:, :OUT]


def init_params(key):
    """Deterministic init mimicking PyTorch defaults (U(-1/sqrt(fan_in), 1/sqrt(fan_in)))."""
    k1, k2, k3, k4 = jax.random.split(key, 4)
    bound1 = 1.0 / jnp.sqrt(IN_FEATURES)
    w1 = jax.random.uniform(k1, (IN_FEATURES, HIDDEN), jnp.float32, -bound1, bound1)
    b1 = jax.random.uniform(k2, (1, HIDDEN), jnp.float32, -bound1, bound1)
    gamma = jnp.ones((1, HIDDEN), jnp.float32)   # BatchNorm1d weight
    beta = jnp.zeros((1, HIDDEN), jnp.float32)   # BatchNorm1d bias
    bound2 = 1.0 / jnp.sqrt(HIDDEN)
    w2 = jax.random.uniform(k3, (HIDDEN, OUT), jnp.float32, -bound2, bound2)
    b2 = jax.random.uniform(k4, (1, OUT), jnp.float32, -bound2, bound2)
    return (w1, b1, gamma, beta, w2, b2)


if __name__ == "__main__":
    key = jax.random.PRNGKey(0)
    kx, kp = jax.random.split(key)

    B = 8
    x = jax.random.normal(kx, (B, 1, 28, 28), jnp.float32)  # NCHW, MNIST-like
    params = init_params(kp)
    prepared = prepare_params(params)  # pad/pack weights once

    logits = neural_network_forward(x, prepared)
    logits = jax.block_until_ready(logits)

    # Pure-JAX reference with the ORIGINAL PyTorch semantics (including b1);
    # the kernel drops b1 because BN cancels it exactly (up to fp rounding).
    x2d = x.reshape(B, -1)
    w1, b1, gamma, beta, w2, b2 = params
    h = x2d @ w1 + b1
    mu = h.mean(axis=0, keepdims=True)
    var = ((h - mu) ** 2).mean(axis=0, keepdims=True)
    h = (h - mu) / jnp.sqrt(var + EPS) * gamma + beta
    ref = jnp.maximum(h, 0.0) @ w2 + b2

    assert logits.shape == (B, OUT)
    assert jnp.allclose(logits, ref, atol=1e-4, rtol=1e-4)
    print("KERNEL_OK")
</pallas_src>

<mosaic_0001>
module attributes {stable_mosaic.version = 11 : i64} {
  func.func @mlp_bn_kernel(%arg0: memref<8x784xf32, #tpu.memory_space<vmem>>, %arg1: memref<784x128xf32, #tpu.memory_space<vmem>>, %arg2: memref<128x128xf32, #tpu.memory_space<vmem>>, %arg3: memref<8x128xf32, #tpu.memory_space<vmem>>, %arg4: memref<8x128xf32, #tpu.memory_space<vmem>>) attributes {dimension_semantics = [], scalar_prefetch = 0 : i64, scratch_operands = 0 : i64, tpu.core_type = #tpu.core_type<tc>} {
    %c0 = arith.constant 0 : index
    %c0_0 = arith.constant 0 : index
    %0 = vector.load %arg0[%c0, %c0_0] : memref<8x784xf32, #tpu.memory_space<vmem>>, vector<8x784xf32>
    %c0_1 = arith.constant 0 : index
    %c0_2 = arith.constant 0 : index
    %1 = vector.load %arg3[%c0_1, %c0_2] : memref<8x128xf32, #tpu.memory_space<vmem>>, vector<1x128xf32>
    %c1 = arith.constant 1 : index
    %c0_3 = arith.constant 0 : index
    %2 = vector.load %arg3[%c1, %c0_3] : memref<8x128xf32, #tpu.memory_space<vmem>>, vector<1x128xf32>
    %c2 = arith.constant 2 : index
    %c0_4 = arith.constant 0 : index
    %3 = vector.load %arg3[%c2, %c0_4] : memref<8x128xf32, #tpu.memory_space<vmem>>, vector<1x128xf32>
    %c0_5 = arith.constant 0 : index
    %c0_6 = arith.constant 0 : index
    %4 = vector.load %arg1[%c0_5, %c0_6] : memref<784x128xf32, #tpu.memory_space<vmem>>, vector<784x128xf32>
    %cst = arith.constant dense<0.000000e+00> : vector<8x128xf32>
    %5 = tpu.matmul %0, %4, %cst {dimension_numbers = #tpu.dot_dimension_numbers<[1], [0], [0], [1], [0, 0, 1, 1], [], []>} : vector<8x784xf32>, vector<784x128xf32>, vector<8x128xf32> -> vector<8x128xf32>
    %cst_7 = arith.constant dense<0.000000e+00> : vector<128xf32>
    %6 = vector.multi_reduction <add>, %5, %cst_7 [0] : vector<8x128xf32> to vector<128xf32>
    %7 = vector.shape_cast %6 : vector<128xf32> to vector<1x128xf32>
    %cst_8 = arith.constant 8.000000e+00 : f32
    %8 = vector.broadcast %cst_8 : f32 to vector<1x128xf32>
    %9 = arith.divf %7, %8 : vector<1x128xf32>
    %10 = vector.broadcast %9 : vector<1x128xf32> to vector<8x128xf32>
    %11 = arith.subf %5, %10 : vector<8x128xf32>
    %12 = arith.mulf %11, %11 : vector<8x128xf32>
    %cst_9 = arith.constant dense<0.000000e+00> : vector<128xf32>
    %13 = vector.multi_reduction <add>, %12, %cst_9 [0] : vector<8x128xf32> to vector<128xf32>
    %14 = vector.shape_cast %13 : vector<128xf32> to vector<1x128xf32>
    %cst_10 = arith.constant 8.000000e+00 : f32
    %15 = vector.broadcast %cst_10 : f32 to vector<1x128xf32>
    %16 = arith.divf %14, %15 : vector<1x128xf32>
    %cst_11 = arith.constant 9.99999974E-6 : f32
    %17 = vector.broadcast %cst_11 : f32 to vector<1x128xf32>
    %18 = arith.addf %16, %17 : vector<1x128xf32>
    %19 = math.rsqrt %18 : vector<1x128xf32>
    %20 = arith.mulf %1, %19 : vector<1x128xf32>
    %21 = vector.broadcast %20 : vector<1x128xf32> to vector<8x128xf32>
    %22 = arith.mulf %11, %21 : vector<8x128xf32>
    %23 = vector.broadcast %2 : vector<1x128xf32> to vector<8x128xf32>
    %24 = arith.addf %22, %23 : vector<8x128xf32>
    %cst_12 = arith.constant 0.000000e+00 : f32
    %25 = vector.broadcast %cst_12 : f32 to vector<8x128xf32>
    %26 = arith.maximumf %24, %25 : vector<8x128xf32>
    %c0_13 = arith.constant 0 : index
    %c0_14 = arith.constant 0 : index
    %27 = vector.load %arg2[%c0_13, %c0_14] : memref<128x128xf32, #tpu.memory_space<vmem>>, vector<128x128xf32>
    %cst_15 = arith.constant dense<0.000000e+00> : vector<8x128xf32>
    %28 = tpu.matmul %26, %27, %cst_15 {dimension_numbers = #tpu.dot_dimension_numbers<[1], [0], [0], [1], [0, 0, 1, 1], [], []>} : vector<8x128xf32>, vector<128x128xf32>, vector<8x128xf32> -> vector<8x128xf32>
    %29 = vector.broadcast %3 : vector<1x128xf32> to vector<8x128xf32>
    %30 = arith.addf %28, %29 : vector<8x128xf32>
    %c0_16 = arith.constant 0 : index
    %c0_17 = arith.constant 0 : index
    %31 = vector.load %arg4[%c0_16, %c0_17] : memref<8x128xf32, #tpu.memory_space<vmem>>, vector<8x128xf32>
    tpu.vector_store %arg4[%c0_16, %c0_17], %30 {strides = array<i32>} : memref<8x128xf32, #tpu.memory_space<vmem>>, vector<8x128xf32>,
    return
  }
}

</mosaic_0001>

<llo_original>
// kernel: tpu_custom_call.1
$region0: #{tpu_custom_call.1}
  #allocation0 [shape = 'u32[]', space=smem, size = 0x4, offset = 0x4, fixed_abs, tag = 'smem constant byte address 0x4 - core index']
  #allocation1 [shape = 'u32[72,128]{1,0:T(1,128)}', space=vmem, size = 0x9000, scoped, tag = 'internal scratch']
  %s0 = inlined_call_operand.hbm [shape: f32[8,784], index: 0, kind: input, shape index: {}]
  %s1 = inlined_call_operand.hbm [shape: f32[784,128], index: 1, kind: input, shape index: {}]
  %s2 = inlined_call_operand.hbm [shape: f32[128,128], index: 2, kind: input, shape index: {}]
  %s3 = inlined_call_operand.hbm [shape: f32[8,128], index: 3, kind: input, shape index: {}]
  %s4 = inlined_call_operand.hbm [shape: f32[8,128], index: 4, kind: output, shape index: {}]
  %s5 = sld [smem:[#allocation0]]
  $region42: #{tpu_custom_call.1} parent=0
    _
  %s7 = ssub.s32 1, %s5
  %s8 = scalar_select 0, %s7, %s5
  $region1: #{tpu_custom_call.1} parent=0
    #allocation2 [shape = 'u8[28672]{0}', space=vmem, size = 0x7000, scoped, tag = 'input window, operand 0, single buffered']
    #allocation3 [shape = 's32[1]{0}', space=sflag, size = 0x4, scoped, tag = 'scoped memory for tpu_custom_call.1']
    #allocation4 [shape = 's32[1]{0}', space=sflag, size = 0x4, scoped, tag = 'scoped memory for tpu_custom_call.1']
    #allocation5 [shape = 'u8[401408]{0}', space=vmem, size = 0x62000, scoped, tag = 'input window, operand 1, single buffered']
    #allocation6 [shape = 's32[1]{0}', space=sflag, size = 0x4, scoped, tag = 'scoped memory for tpu_custom_call.1']
    #allocation7 [shape = 'u8[65536]{0}', space=vmem, size = 0x10000, scoped, tag = 'input window, operand 2, single buffered']
    #allocation8 [shape = 'u8[4096]{0}', space=vmem, size = 0x1000, scoped, tag = 'input window, operand 3, single buffered']
    #allocation9 [shape = 's32[1]{0}', space=sflag, size = 0x4, scoped, tag = 'scoped memory for tpu_custom_call.1']
    #allocation10 [shape = 'u8[4096]{0}', space=vmem, size = 0x1000, scoped, tag = 'output window, operand 0, single buffered']
    %9 = vsyncpa [#allocation3], 0
    %10 = vsyncpa [#allocation6], 0
    %11 = vsyncpa [#allocation9], 0
    %12 = vsyncpa [#allocation4], 0
    // Predicated region
    $region2: #{tpu_custom_call.1} parent=1 // pred_check
      _
    $region3: #{tpu_custom_call.1} parent=1 // pred_check_branch
      %14 = sbr.rel (0) target = $region5
    $region4: #{tpu_custom_call.1} parent=1 // pred_region
      %16 = vsyncadd [#allocation3], 0
      %s18 = sshll.u32 %s0, 4
      %s19 = int_to_ptr.hbm [resolvable:$true] %s18
      %s20 = sshll.u32 [#allocation2], 4
      %s21 = int_to_ptr.vmem [resolvable:$true] %s20
      %23 = dma.hbm_to_vmem [thread:$0]  %s19, 896, %s21, [#allocation3]
    $region5: #{tpu_custom_call.1} parent=1 // pred_fallthru
      _
    // Predicated region
    $region6: #{tpu_custom_call.1} parent=1 // pred_check
      _
    $region7: #{tpu_custom_call.1} parent=1 // pred_check_branch
      %25 = sbr.rel (0) target = $region9
    $region8: #{tpu_custom_call.1} parent=1 // pred_region
      %27 = vsyncadd [#allocation6], 0
      %s28 = sshll.u32 %s1, 4
      %s29 = int_to_ptr.hbm [resolvable:$true] %s28
      %s30 = sshll.u32 [#allocation5], 4
      %s31 = int_to_ptr.vmem [resolvable:$true] %s30
      %36 = dma.hbm_to_vmem [thread:$0]  %s29, 12544, %s31, [#allocation6], 128, 128, 8
    $region9: #{tpu_custom_call.1} parent=1 // pred_fallthru
      _
    // Predicated region
    $region10: #{tpu_custom_call.1} parent=1 // pred_check
      _
    $region11: #{tpu_custom_call.1} parent=1 // pred_check_branch
      %38 = sbr.rel (0) target = $region13
    $region12: #{tpu_custom_call.1} parent=1 // pred_region
      %40 = vsyncadd [#allocation6], 0
      %s41 = sshll.u32 %s2, 4
      %s42 = int_to_ptr.hbm [resolvable:$true] %s41
      %s43 = sshll.u32 [#allocation7], 4
      %s44 = int_to_ptr.vmem [resolvable:$true] %s43
      %49 = dma.hbm_to_vmem [thread:$0]  %s42, 2048, %s44, [#allocation6], 128, 128, 8
    $region13: #{tpu_custom_call.1} parent=1 // pred_fallthru
      _
    // Predicated region
    $region14: #{tpu_custom_call.1} parent=1 // pred_check
      _
    $region15: #{tpu_custom_call.1} parent=1 // pred_check_branch
      %51 = sbr.rel (0) target = $region17
    $region16: #{tpu_custom_call.1} parent=1 // pred_region
      %53 = vsyncadd [#allocation9], 0
      %s55 = sshll.u32 %s3, 4
      %s56 = int_to_ptr.hbm [resolvable:$true] %s55
      %s57 = sshll.u32 [#allocation8], 4
      %s58 = int_to_ptr.vmem [resolvable:$true] %s57
      %60 = dma.hbm_to_vmem [thread:$0]  %s56, 128, %s58, [#allocation9]
    $region17: #{tpu_custom_call.1} parent=1 // pred_fallthru
      _
    // Predicated region
    $region18: #{tpu_custom_call.1} parent=1 // pred_check
      _
    $region19: #{tpu_custom_call.1} parent=1 // pred_check_branch
      %62 = sbr.rel (0) target = $region21
    $region20: #{tpu_custom_call.1} parent=1 // pred_region
      %64 = dma.done [#allocation3], 896
    $region21: #{tpu_custom_call.1} parent=1 // pred_fallthru
      _
    // Predicated region
    $region22: #{tpu_custom_call.1} parent=1 // pred_check
      _
    $region23: #{tpu_custom_call.1} parent=1 // pred_check_branch
      %66 = sbr.rel (0) target = $region25
    $region24: #{tpu_custom_call.1} parent=1 // pred_region
      %68 = dma.done [#allocation6], 12544
    $region25: #{tpu_custom_call.1} parent=1 // pred_fallthru
      _
    // Predicated region
    $region26: #{tpu_custom_call.1} parent=1 // pred_check
      _
    $region27: #{tpu_custom_call.1} parent=1 // pred_check_branch
      %70 = sbr.rel (0) target = $region29
    $region28: #{tpu_custom_call.1} parent=1 // pred_region
      %72 = dma.done [#allocation6], 2048
    $region29: #{tpu_custom_call.1} parent=1 // pred_fallthru
      _
    // Predicated region
    $region30: #{tpu_custom_call.1} parent=1 // pred_check
      _
    $region31: #{tpu_custom_call.1} parent=1 // pred_check_branch
      %74 = sbr.rel (0) target = $region33
    $region32: #{tpu_custom_call.1} parent=1 // pred_region
      %76 = dma.done [#allocation9], 128
    $region33: #{tpu_custom_call.1} parent=1 // pred_fallthru
      _
    %v77 = vld [vmem:[#allocation2] sm:$0xff]
    %v78 = vld [vmem:[#allocation2 + $0x8] sm:$0xff]
    %v79 = vld [vmem:[#allocation2 + $0x10] sm:$0xff]
    %v80 = vld [vmem:[#allocation2 + $0x18] sm:$0xff]
    %v81 = vld [vmem:[#allocation2 + $0x20] sm:$0xff]
    %v82 = vld [vmem:[#allocation2 + $0x28] sm:$0xff]
    %v83 = vld [vmem:[#allocation2 + $0x30] sm:$0xff]
    %v84 = vld [vmem:[#allocation8] sm:$0x1]
    %v85 = vld [vmem:[#allocation8 + $0x1] sm:$0x1]
    %v86 = vld [vmem:[#allocation8 + $0x2] sm:$0x1]
    %v87 = vld [vmem:[#allocation5] sm:$0xff]
    %v88 = vld [vmem:[#allocation5 + $0x8] sm:$0xff]
    %v89 = vld [vmem:[#allocation5 + $0x10] sm:$0xff]
    %v90 = vld [vmem:[#allocation5 + $0x18] sm:$0xff]
    %v91 = vld [vmem:[#allocation5 + $0x20] sm:$0xff]
    %v92 = vld [vmem:[#allocation5 + $0x28] sm:$0xff]
    %v93 = vld [vmem:[#allocation5 + $0x30] sm:$0xff]
    %v94 = vld [vmem:[#allocation5 + $0x38] sm:$0xff]
    %v95 = vld [vmem:[#allocation5 + $0x40] sm:$0xff]
    %v96 = vld [vmem:[#allocation5 + $0x48] sm:$0xff]
    %v97 = vld [vmem:[#allocation5 + $0x50] sm:$0xff]
    %v98 = vld [vmem:[#allocation5 + $0x58] sm:$0xff]
    %v99 = vld [vmem:[#allocation5 + $0x60] sm:$0xff]
    %v100 = vld [vmem:[#allocation5 + $0x68] sm:$0xff]
    %v101 = vld [vmem:[#allocation5 + $0x70] sm:$0xff]
    %v102 = vld [vmem:[#allocation5 + $0x78] sm:$0xff]
    %v103 = vld [vmem:[#allocation5 + $0x80] sm:$0xff]
    %v104 = vld [vmem:[#allocation5 + $0x88] sm:$0xff]
    %v105 = vld [vmem:[#allocation5 + $0x90] sm:$0xff]
    %v106 = vld [vmem:[#allocation5 + $0x98] sm:$0xff]
    %v107 = vld [vmem:[#allocation5 + $0xa0] sm:$0xff]
    %v108 = vld [vmem:[#allocation5 + $0xa8] sm:$0xff]
    %v109 = vld [vmem:[#allocation5 + $0xb0] sm:$0xff]
    %v110 = vld [vmem:[#allocation5 + $0xb8] sm:$0xff]
    %v111 = vld [vmem:[#allocation5 + $0xc0] sm:$0xff]
    %v112 = vld [vmem:[#allocation5 + $0xc8] sm:$0xff]
    %v113 = vld [vmem:[#allocation5 + $0xd0] sm:$0xff]
    %v114 = vld [vmem:[#allocation5 + $0xd8] sm:$0xff]
    %v115 = vld [vmem:[#allocation5 + $0xe0] sm:$0xff]
    %v116 = vld [vmem:[#allocation5 + $0xe8] sm:$0xff]
    %v117 = vld [vmem:[#allocation5 + $0xf0] sm:$0xff]
    %v118 = vld [vmem:[#allocation5 + $0xf8] sm:$0xff]
    %v119 = vld [vmem:[#allocation5 + $0x100] sm:$0xff]
    %v120 = vld [vmem:[#allocation5 + $0x108] sm:$0xff]
    %v121 = vld [vmem:[#allocation5 + $0x110] sm:$0xff]
    %v122 = vld [vmem:[#allocation5 + $0x118] sm:$0xff]
    %v123 = vld [vmem:[#allocation5 + $0x120] sm:$0xff]
    %v124 = vld [vmem:[#allocation5 + $0x128] sm:$0xff]
    %v125 = vld [vmem:[#allocation5 + $0x130] sm:$0xff]
    %v126 = vld [vmem:[#allocation5 + $0x138] sm:$0xff]
    %v127 = vld [vmem:[#allocation5 + $0x140] sm:$0xff]
    %v128 = vld [vmem:[#allocation5 + $0x148] sm:$0xff]
    %v129 = vld [vmem:[#allocation5 + $0x150] sm:$0xff]
    %v130 = vld [vmem:[#allocation5 + $0x158] sm:$0xff]
    %v131 = vld [vmem:[#allocation5 + $0x160] sm:$0xff]
    %v132 = vld [vmem:[#allocation5 + $0x168] sm:$0xff]
    %v133 = vld [vmem:[#allocation5 + $0x170] sm:$0xff]
    %v134 = vld [vmem:[#allocation5 + $0x178] sm:$0xff]
    %v135 = vld [vmem:[#allocation5 + $0x180] sm:$0xff]
    %v136 = vld [vmem:[#allocation5 + $0x188] sm:$0xff]
    %v137 = vld [vmem:[#allocation5 + $0x190] sm:$0xff]
    %v138 = vld [vmem:[#allocation5 + $0x198] sm:$0xff]
    %v139 = vld [vmem:[#allocation5 + $0x1a0] sm:$0xff]
    %v140 = vld [vmem:[#allocation5 + $0x1a8] sm:$0xff]
    %v141 = vld [vmem:[#allocation5 + $0x1b0] sm:$0xff]
    %v142 = vld [vmem:[#allocation5 + $0x1b8] sm:$0xff]
    %v143 = vld [vmem:[#allocation5 + $0x1c0] sm:$0xff]
    %v144 = vld [vmem:[#allocation5 + $0x1c8] sm:$0xff]
    %v145 = vld [vmem:[#allocation5 + $0x1d0] sm:$0xff]
    %v146 = vld [vmem:[#allocation5 + $0x1d8] sm:$0xff]
    %v147 = vld [vmem:[#allocation5 + $0x1e0] sm:$0xff]
    %v148 = vld [vmem:[#allocation5 + $0x1e8] sm:$0xff]
    %v149 = vld [vmem:[#allocation5 + $0x1f0] sm:$0xff]
    %v150 = vld [vmem:[#allocation5 + $0x1f8] sm:$0xff]
    %v151 = vld [vmem:[#allocation5 + $0x200] sm:$0xff]
    %v152 = vld [vmem:[#allocation5 + $0x208] sm:$0xff]
    %v153 = vld [vmem:[#allocation5 + $0x210] sm:$0xff]
    %v154 = vld [vmem:[#allocation5 + $0x218] sm:$0xff]
    %v155 = vld [vmem:[#allocation5 + $0x220] sm:$0xff]
    %v156 = vld [vmem:[#allocation5 + $0x228] sm:$0xff]
    %v157 = vld [vmem:[#allocation5 + $0x230] sm:$0xff]
    %v158 = vld [vmem:[#allocation5 + $0x238] sm:$0xff]
    %v159 = vld [vmem:[#allocation5 + $0x240] sm:$0xff]
    %v160 = vld [vmem:[#allocation5 + $0x248] sm:$0xff]
    %v161 = vld [vmem:[#allocation5 + $0x250] sm:$0xff]
    %v162 = vld [vmem:[#allocation5 + $0x258] sm:$0xff]
    %v163 = vld [vmem:[#allocation5 + $0x260] sm:$0xff]
    %v164 = vld [vmem:[#allocation5 + $0x268] sm:$0xff]
    %v165 = vld [vmem:[#allocation5 + $0x270] sm:$0xff]
    %v166 = vld [vmem:[#allocation5 + $0x278] sm:$0xff]
    %v167 = vld [vmem:[#allocation5 + $0x280] sm:$0xff]
    %v168 = vld [vmem:[#allocation5 + $0x288] sm:$0xff]
    %v169 = vld [vmem:[#allocation5 + $0x290] sm:$0xff]
    %v170 = vld [vmem:[#allocation5 + $0x298] sm:$0xff]
    %v171 = vld [vmem:[#allocation5 + $0x2a0] sm:$0xff]
    %v172 = vld [vmem:[#allocation5 + $0x2a8] sm:$0xff]
    %v173 = vld [vmem:[#allocation5 + $0x2b0] sm:$0xff]
    %v174 = vld [vmem:[#allocation5 + $0x2b8] sm:$0xff]
    %v175 = vld [vmem:[#allocation5 + $0x2c0] sm:$0xff]
    %v176 = vld [vmem:[#allocation5 + $0x2c8] sm:$0xff]
    %v177 = vld [vmem:[#allocation5 + $0x2d0] sm:$0xff]
    %v178 = vld [vmem:[#allocation5 + $0x2d8] sm:$0xff]
    %v179 = vld [vmem:[#allocation5 + $0x2e0] sm:$0xff]
    %v180 = vld [vmem:[#allocation5 + $0x2e8] sm:$0xff]
    %v181 = vld [vmem:[#allocation5 + $0x2f0] sm:$0xff]
    %v182 = vld [vmem:[#allocation5 + $0x2f8] sm:$0xff]
    %v183 = vld [vmem:[#allocation5 + $0x300] sm:$0xff]
    %v184 = vld [vmem:[#allocation5 + $0x308] sm:$0xff]
    %vm185 = vcmask 130048
    %v187 = vsel %vm185, %v83, 0
    %189 = vmatpush.msra.mxu0 %v102
    %190 = vmatpush.msra.mxu0 %v101
    %191 = vmatpush.msra.mxu0 %v100
    %192 = vmatpush.msra.mxu0 %v99
    %193 = vmatpush.msra.mxu0 %v98
    %194 = vmatpush.msra.mxu0 %v97
    %195 = vmatpush.msra.mxu0 %v96
    %196 = vmatpush.msra.mxu0 %v95
    %197 = vmatpush.msra.mxu0 %v94
    %198 = vmatpush.msra.mxu0 %v93
    %199 = vmatpush.msra.mxu0 %v92
    %200 = vmatpush.msra.mxu0 %v91
    %201 = vmatpush.msra.mxu0 %v90
    %202 = vmatpush.msra.mxu0 %v89
    %203 = vmatpush.msra.mxu0 %v88
    %204 = vmatpush.msra.mxu0 %v87
    %205 = vmatmul.f32.gmra.mxu0 %v77
    %v206 = vpop.f32.mrf.mxu0
    %v207 = vadd.f32 0.0, %v206
    %208 = vdwg.mxu0
    %209 = vmatpush.msra.mxu0 %v118
    %210 = vmatpush.msra.mxu0 %v117
    %211 = vmatpush.msra.mxu0 %v116
    %212 = vmatpush.msra.mxu0 %v115
    %213 = vmatpush.msra.mxu0 %v114
    %214 = vmatpush.msra.mxu0 %v113
    %215 = vmatpush.msra.mxu0 %v112
    %216 = vmatpush.msra.mxu0 %v111
    %217 = vmatpush.msra.mxu0 %v110
    %218 = vmatpush.msra.mxu0 %v109
    %219 = vmatpush.msra.mxu0 %v108
    %220 = vmatpush.msra.mxu0 %v107
    %221 = vmatpush.msra.mxu0 %v106
    %222 = vmatpush.msra.mxu0 %v105
    %223 = vmatpush.msra.mxu0 %v104
    %224 = vmatpush.msra.mxu0 %v103
    %225 = vmatmul.f32.gmra.mxu0 %v78
    %v226 = vpop.f32.mrf.mxu0
    %v227 = vadd.f32 %v207, %v226
    %228 = vdwg.mxu0
    %229 = vmatpush.msra.mxu0 %v134
    %230 = vmatpush.msra.mxu0 %v133
    %231 = vmatpush.msra.mxu0 %v132
    %232 = vmatpush.msra.mxu0 %v131
    %233 = vmatpush.msra.mxu0 %v130
    %234 = vmatpush.msra.mxu0 %v129
    %235 = vmatpush.msra.mxu0 %v128
    %236 = vmatpush.msra.mxu0 %v127
    %237 = vmatpush.msra.mxu0 %v126
    %238 = vmatpush.msra.mxu0 %v125
    %239 = vmatpush.msra.mxu0 %v124
    %240 = vmatpush.msra.mxu0 %v123
    %241 = vmatpush.msra.mxu0 %v122
    %242 = vmatpush.msra.mxu0 %v121
    %243 = vmatpush.msra.mxu0 %v120
    %244 = vmatpush.msra.mxu0 %v119
    %245 = vmatmul.f32.gmra.mxu0 %v79
    %v246 = vpop.f32.mrf.mxu0
    %v247 = vadd.f32 %v227, %v246
    %248 = vdwg.mxu0
    %249 = vmatpush.msra.mxu0 %v150
    %250 = vmatpush.msra.mxu0 %v149
    %251 = vmatpush.msra.mxu0 %v148
    %252 = vmatpush.msra.mxu0 %v147
    %253 = vmatpush.msra.mxu0 %v146
    %254 = vmatpush.msra.mxu0 %v145
    %255 = vmatpush.msra.mxu0 %v144
    %256 = vmatpush.msra.mxu0 %v143
    %257 = vmatpush.msra.mxu0 %v142
    %258 = vmatpush.msra.mxu0 %v141
    %259 = vmatpush.msra.mxu0 %v140
    %260 = vmatpush.msra.mxu0 %v139
    %261 = vmatpush.msra.mxu0 %v138
    %262 = vmatpush.msra.mxu0 %v137
    %263 = vmatpush.msra.mxu0 %v136
    %264 = vmatpush.msra.mxu0 %v135
    %265 = vmatmul.f32.gmra.mxu0 %v80
    %v266 = vpop.f32.mrf.mxu0
    %v267 = vadd.f32 %v247, %v266
    %268 = vdwg.mxu0
    %269 = vmatpush.msra.mxu0 %v166
    %270 = vmatpush.msra.mxu0 %v165
    %271 = vmatpush.msra.mxu0 %v164
    %272 = vmatpush.msra.mxu0 %v163
    %273 = vmatpush.msra.mxu0 %v162
    %274 = vmatpush.msra.mxu0 %v161
    %275 = vmatpush.msra.mxu0 %v160
    %276 = vmatpush.msra.mxu0 %v159
    %277 = vmatpush.msra.mxu0 %v158
    %278 = vmatpush.msra.mxu0 %v157
    %279 = vmatpush.msra.mxu0 %v156
    %280 = vmatpush.msra.mxu0 %v155
    %281 = vmatpush.msra.mxu0 %v154
    %282 = vmatpush.msra.mxu0 %v153
    %283 = vmatpush.msra.mxu0 %v152
    %284 = vmatpush.msra.mxu0 %v151
    %285 = vmatmul.f32.gmra.mxu0 %v81
    %v286 = vpop.f32.mrf.mxu0
    %v287 = vadd.f32 %v267, %v286
    %288 = vdwg.mxu0
    %289 = vmatpush.msra.mxu0 %v182
    %290 = vmatpush.msra.mxu0 %v181
    %291 = vmatpush.msra.mxu0 %v180
    %292 = vmatpush.msra.mxu0 %v179
    %293 = vmatpush.msra.mxu0 %v178
    %294 = vmatpush.msra.mxu0 %v177
    %295 = vmatpush.msra.mxu0 %v176
    %296 = vmatpush.msra.mxu0 %v175
    %297 = vmatpush.msra.mxu0 %v174
    %298 = vmatpush.msra.mxu0 %v173
    %299 = vmatpush.msra.mxu0 %v172
    %300 = vmatpush.msra.mxu0 %v171
    %301 = vmatpush.msra.mxu0 %v170
    %302 = vmatpush.msra.mxu0 %v169
    %303 = vmatpush.msra.mxu0 %v168
    %304 = vmatpush.msra.mxu0 %v167
    %305 = vmatmul.f32.gmra.mxu0 %v82
    %v306 = vpop.f32.mrf.mxu0
    %v307 = vadd.f32 %v287, %v306
    %308 = vdwg.mxu0
    %309 = vmatpush.msra.mxu0 0.0
    %310 = vmatpush.msra.mxu0 0.0
    %311 = vmatpush.msra.mxu0 0.0
    %312 = vmatpush.msra.mxu0 0.0
    %313 = vmatpush.msra.mxu0 0.0
    %314 = vmatpush.msra.mxu0 0.0
    %315 = vmatpush.msra.mxu0 0.0
    %316 = vmatpush.msra.mxu0 0.0
    %317 = vmatpush.msra.mxu0 0.0
    %318 = vmatpush.msra.mxu0 0.0
    %319 = vmatpush.msra.mxu0 0.0
    %320 = vmatpush.msra.mxu0 0.0
    %321 = vmatpush.msra.mxu0 0.0
    %322 = vmatpush.msra.mxu0 0.0
    %323 = vmatpush.msra.mxu0 %v184
    %324 = vmatpush.msra.mxu0 %v183
    %325 = vmatmul.f32.gmra.mxu0 %v187
    %v326 = vpop.f32.mrf.mxu0
    %v327 = vadd.f32 %v307, %v326
    %328 = vdwg.mxu0
    %v329 = vrot.slane %v327, 4
    %v330 = vadd.f32 %v327, %v329
    %v331 = vrot.slane %v330, 2
    %v332 = vadd.f32 %v330, %v331
    %v333 = vrot.slane %v332, 1
    %v334 = vadd.f32 %v332, %v333
    %v335 = vrcp.pop 8.0
    %v336 = vmul.f32 8.0, %v335
    %v337 = vsub.f32 1.0, %v336
    %v338 = vmul.f32 %v335, %v337
    %v339 = vadd.f32 %v335, %v338
    %vm340 = vweird.f32 %v335
    %v341 = vsel %vm340, %v335, %v339
    %v342 = vmul.f32 %v334, %v341
    %v343 = vsub.f32 %v327, %v342
    %v344 = vmul.f32 %v343, %v343
    %v345 = vrot.slane %v344, 4
    %v346 = vadd.f32 %v344, %v345
    %v347 = vrot.slane %v346, 2
    %v348 = vadd.f32 %v346, %v347
    %v349 = vrot.slane %v348, 1
    %v350 = vadd.f32 %v348, %v349
    %v351 = vmul.f32 %v350, %v341
    %v352 = vadd.f32 %v351, 1e-05
    %v353 = vrsqrt.pop %v352
    %v354 = vmul.f32 %v353, %v352
    %v355 = vmul.f32 %v354, %v353
    %v356 = vmul.f32 0.5, %v355
    %v357 = vsub.f32 1.5, %v356
    %v358 = vmul.f32 %v353, %v357
    %vm359 = vweird.f32 %v352
    %vm360 = vweird.f32 %v353
    %vm361 = vmor %vm359, %vm360
    %v362 = vsel %vm361, %v353, %v358
    %v363 = vmul.f32 %v84, %v362
    %v364 = vperm.slane %v363, 0
    %v365 = vmul.f32 %v343, %v364
    %v366 = vperm.slane %v85, 0
    %v367 = vadd.f32 %v365, %v366
    %v368 = vmax.f32 %v367, 0.0
    %v369 = vld [vmem:[#allocation7] sm:$0xff]
    %v370 = vld [vmem:[#allocation7 + $0x8] sm:$0xff]
    %v371 = vld [vmem:[#allocation7 + $0x10] sm:$0xff]
    %v372 = vld [vmem:[#allocation7 + $0x18] sm:$0xff]
    %v373 = vld [vmem:[#allocation7 + $0x20] sm:$0xff]
    %v374 = vld [vmem:[#allocation7 + $0x28] sm:$0xff]
    %v375 = vld [vmem:[#allocation7 + $0x30] sm:$0xff]
    %v376 = vld [vmem:[#allocation7 + $0x38] sm:$0xff]
    %v377 = vld [vmem:[#allocation7 + $0x40] sm:$0xff]
    %v378 = vld [vmem:[#allocation7 + $0x48] sm:$0xff]
    %v379 = vld [vmem:[#allocation7 + $0x50] sm:$0xff]
    %v380 = vld [vmem:[#allocation7 + $0x58] sm:$0xff]
    %v381 = vld [vmem:[#allocation7 + $0x60] sm:$0xff]
    %v382 = vld [vmem:[#allocation7 + $0x68] sm:$0xff]
    %v383 = vld [vmem:[#allocation7 + $0x70] sm:$0xff]
    %v384 = vld [vmem:[#allocation7 + $0x78] sm:$0xff]
    %v385 = vperm.slane %v86, 0
    %386 = vmatpush.msra.mxu0 %v384
    %387 = vmatpush.msra.mxu0 %v383
    %388 = vmatpush.msra.mxu0 %v382
    %389 = vmatpush.msra.mxu0 %v381
    %390 = vmatpush.msra.mxu0 %v380
    %391 = vmatpush.msra.mxu0 %v379
    %392 = vmatpush.msra.mxu0 %v378
    %393 = vmatpush.msra.mxu0 %v377
    %394 = vmatpush.msra.mxu0 %v376
    %395 = vmatpush.msra.mxu0 %v375
    %396 = vmatpush.msra.mxu0 %v374
    %397 = vmatpush.msra.mxu0 %v373
    %398 = vmatpush.msra.mxu0 %v372
    %399 = vmatpush.msra.mxu0 %v371
    %400 = vmatpush.msra.mxu0 %v370
    %401 = vmatpush.msra.mxu0 %v369
    %402 = vmatmul.f32.gmra.mxu0 %v368
    %v403 = vpop.f32.mrf.mxu0
    %v404 = vadd.f32 %v385, %v403
    %405 = vdwg.mxu0
    %406 = vst [vmem:[#allocation10] sm:$0xff] %v404
    // Predicated region
    $region34: #{tpu_custom_call.1} parent=1 // pred_check
      _
    $region35: #{tpu_custom_call.1} parent=1 // pred_check_branch
      %408 = sbr.rel (0) target = $region37
    $region36: #{tpu_custom_call.1} parent=1 // pred_region
      %410 = vsyncadd [#allocation4], 0
      %s412 = sshll.u32 [#allocation10], 4
      %s413 = int_to_ptr.vmem [resolvable:$true] %s412
      %s414 = sshll.u32 %s4, 4
      %s415 = int_to_ptr.hbm [resolvable:$true] %s414
      %417 = dma.vmem_to_hbm [thread:$0]  %s413, 128, %s415, [#allocation4]
    $region37: #{tpu_custom_call.1} parent=1 // pred_fallthru
      _
    // Predicated region
    $region38: #{tpu_custom_call.1} parent=1 // pred_check
      _
    $region39: #{tpu_custom_call.1} parent=1 // pred_check_branch
      %419 = sbr.rel (0) target = $region41
    $region40: #{tpu_custom_call.1} parent=1 // pred_region
      %421 = dma.done [#allocation4], 128
    $region41: #{tpu_custom_call.1} parent=1 // pred_fallthru
      _
    %422 = vsyncpa [#allocation3], 1
    %423 = vsyncpa [#allocation6], 1
    %424 = vsyncpa [#allocation9], 1
    %425 = vsyncpa [#allocation4], 1

</llo_original>
